<compile_context>
chip_gen: v5e
topology: v5e:2x2
jax: 0.10.0
libtpu: 0.0.40
codegen_flags: <defaults>
</compile_context>

<pallas_src>
import functools

import jax
import jax.numpy as jnp
from jax.experimental import pallas as pl
from jax.experimental.pallas import tpu as pltpu

IN_DIM = 512
HID_DIM = 24
OUT_DIM = 2

HID_PAD = 128   # hidden dim padded to one full lane width (MXU-native)
OUT_PAD = 8     # output dim padded only to 8 -> 32 B/row writeback


def _round_up(x, m):
    return ((x + m - 1) // m) * m


def _choose_tb(batch, block_b):
    """Batch tile: aim for >=4 grid steps (pipeline + both v7x cores), keep a
    ~1024-row floor (per-grid-step overhead), never exceed block_b, and clamp
    to the 8-row-aligned batch so tiny inputs don't pay for a huge tile."""
    tb = _round_up(pl.cdiv(batch, 4), 8)
    tb = max(tb, 1024)
    tb = min(tb, block_b)
    tb = min(tb, _round_up(batch, 8))
    return max(tb, 8)


def mlp_kernel(x_ref, w1_ref, b1_ref, w2_ref, b2_ref, o_ref):
    # (TB, 512) bf16 @ (512, 128) bf16 -> f32 acc -> +b1, ReLU  (MXU + VPU)
    # (TB, 128) f32  @ (128, 8)   f32  -> f32     -> +b2, ReLU  (MXU + VPU)
    # Padded b1 lanes / w2 rows / b2 lanes are zero, so ReLU(0)=0 keeps the
    # extra lanes exactly zero and they contribute nothing.
    x = x_ref[...]
    h = jnp.dot(x, w1_ref[...], preferred_element_type=jnp.float32)
    h = jnp.maximum(h + b1_ref[...], 0.0)
    o = jnp.dot(h, w2_ref[...], preferred_element_type=jnp.float32)
    o_ref[...] = jnp.maximum(o + b2_ref[...], 0.0)


@functools.partial(jax.jit, static_argnames=("block_b",))
def mlp_forward(x, w1p, b1p, w2p, b2p, *, block_b=4096):
    """x: (B, 512).  w1p/b1p/w2p/b2p: padded params from pad_params().

    Returns (B, OUT_DIM) f32.
    """
    B = x.shape[0]
    # bf16 activations halve the dominant HBM read; accumulation stays f32.
    x = x.astype(jnp.bfloat16)

    TB = _choose_tb(B, block_b)
    # No jnp.pad: let the final block overhang; Pallas masks the writeback of
    # rows >= B, so the output contains no garbage rows.
    grid = (pl.cdiv(B, TB),)

    cost = pl.CostEstimate(
        flops=2 * B * (IN_DIM * HID_PAD + HID_PAD * OUT_PAD),
        transcendentals=0,
        bytes_accessed=(2 * B * IN_DIM              # x read (bf16)
                        + 2 * IN_DIM * HID_PAD      # w1 (bf16)
                        + 4 * HID_PAD               # b1 (f32)
                        + 4 * HID_PAD * OUT_PAD     # w2 (f32)
                        + 4 * OUT_PAD               # b2 (f32)
                        + 4 * B * OUT_PAD),         # out write (f32)
    )

    out = pl.pallas_call(
        mlp_kernel,
        out_shape=jax.ShapeDtypeStruct((B, OUT_PAD), jnp.float32),
        grid=grid,
        in_specs=[
            # x: one (TB, 512) tile per grid step -> pipelined HBM read.
            pl.BlockSpec((TB, IN_DIM), lambda i: (i, 0)),
            # Weights / biases: constant index_map -> VMEM-resident.
            pl.BlockSpec((IN_DIM, HID_PAD), lambda i: (0, 0)),
            pl.BlockSpec((1, HID_PAD), lambda i: (0, 0)),
            pl.BlockSpec((HID_PAD, OUT_PAD), lambda i: (0, 0)),
            pl.BlockSpec((1, OUT_PAD), lambda i: (0, 0)),
        ],
        out_specs=pl.BlockSpec((TB, OUT_PAD), lambda i: (i, 0)),
        compiler_params=pltpu.CompilerParams(
            dimension_semantics=("parallel",),   # megacore split on v7x
            vmem_limit_bytes=48 << 20,           # safe on v7x (64 MiB/TC)
        ),
        cost_estimate=cost,
    )(x, w1p, b1p, w2p, b2p)

    return out[:, :OUT_DIM]


def init_params(key):
    # Matches MLP.init_weights(): uniform(-0.1, 0.1) for weights and biases.
    # PyTorch Linear stores weight as (out, in); we keep (in, out) for x @ W.
    initrange = 0.1
    k1, k2, k3, k4 = jax.random.split(key, 4)
    w1 = jax.random.uniform(k1, (IN_DIM, HID_DIM), jnp.float32,
                            -initrange, initrange)
    b1 = jax.random.uniform(k2, (1, HID_DIM), jnp.float32,
                            -initrange, initrange)
    w2 = jax.random.uniform(k3, (HID_DIM, OUT_DIM), jnp.float32,
                            -initrange, initrange)
    b2 = jax.random.uniform(k4, (1, OUT_DIM), jnp.float32,
                            -initrange, initrange)
    return w1, b1, w2, b2


def pad_params(w1, b1, w2, b2):
    """Zero-pad to lane/sublane-aligned shapes; w1 cast to bf16 (MXU-native).
    Padded b1 lanes, padded w2 rows/cols and padded b2 lanes are zero, so the
    extra hidden/output lanes are exactly zero through both ReLUs."""
    w1p = (jnp.zeros((IN_DIM, HID_PAD), jnp.bfloat16)
           .at[:, :HID_DIM].set(w1.astype(jnp.bfloat16)))
    b1p = jnp.zeros((1, HID_PAD), jnp.float32).at[:, :HID_DIM].set(b1)
    w2p = (jnp.zeros((HID_PAD, OUT_PAD), jnp.float32)
           .at[:HID_DIM, :OUT_DIM].set(w2))
    b2p = jnp.zeros((1, OUT_PAD), jnp.float32).at[:, :OUT_DIM].set(b2)
    return w1p, b1p, w2p, b2p


if __name__ == "__main__":
    key = jax.random.PRNGKey(0)
    kx, kp = jax.random.split(key)

    B = 8
    x = jax.random.normal(kx, (B, IN_DIM), jnp.float32)
    w1, b1, w2, b2 = init_params(kp)
    w1p, b1p, w2p, b2p = pad_params(w1, b1, w2, b2)

    out = mlp_forward(x, w1p, b1p, w2p, b2p)
    jax.block_until_ready(out)
    assert out.shape == (B, OUT_DIM)

    # Reference mirroring the kernel's bf16 cast of x / w1 (f32 accumulation).
    xb = x.astype(jnp.bfloat16).astype(jnp.float32)
    w1b = w1.astype(jnp.bfloat16).astype(jnp.float32)
    ref_b = jnp.maximum(jnp.maximum(xb @ w1b + b1, 0.0) @ w2 + b2, 0.0)
    assert jnp.allclose(out, ref_b, atol=1e-2, rtol=1e-2)

    # Full-f32 reference of the original MLP semantics (loose tol: bf16 x/w1).
    ref = jnp.maximum(jnp.maximum(x @ w1 + b1, 0.0) @ w2 + b2, 0.0)
    assert jnp.allclose(out, ref, atol=5e-2, rtol=5e-2)

    # Ragged-grid path: B not a multiple of TB -> multi-step grid with an
    # overhanging final block (masked writeback), no wrapper padding.
    B2 = 50
    x2 = jax.random.normal(jax.random.PRNGKey(1), (B2, IN_DIM), jnp.float32)
    out2 = mlp_forward(x2, w1p, b1p, w2p, b2p, block_b=16)
    jax.block_until_ready(out2)
    assert out2.shape == (B2, OUT_DIM)
    x2b = x2.astype(jnp.bfloat16).astype(jnp.float32)
    ref2 = jnp.maximum(jnp.maximum(x2b @ w1b + b1, 0.0) @ w2 + b2, 0.0)
    assert jnp.allclose(out2, ref2, atol=1e-2, rtol=1e-2)

    print("KERNEL_OK")
</pallas_src>

<mosaic_0001>
module attributes {stable_mosaic.version = 11 : i64} {
  func.func @mlp_kernel(%arg0: i32, %arg1: memref<8x512xbf16, #tpu.memory_space<vmem>>, %arg2: memref<512x128xbf16, #tpu.memory_space<vmem>>, %arg3: memref<1x128xf32, #tpu.memory_space<vmem>>, %arg4: memref<128x8xf32, #tpu.memory_space<vmem>>, %arg5: memref<1x8xf32, #tpu.memory_space<vmem>>, %arg6: memref<8x8xf32, #tpu.memory_space<vmem>>) attributes {dimension_semantics = [#tpu.dimension_semantics<parallel>], iteration_bounds = array<i64: 1>, scalar_prefetch = 0 : i64, scratch_operands = 0 : i64, tpu.core_type = #tpu.core_type<tc>, window_params = [{transform_indices = @transform_0, window_bounds = array<i64: 8, 512>}, {pipeline_mode = #tpu.pipeline_mode<synchronous>, transform_indices = @transform_1, window_bounds = array<i64: 512, 128>}, {pipeline_mode = #tpu.pipeline_mode<synchronous>, transform_indices = @transform_2, window_bounds = array<i64: 1, 128>}, {pipeline_mode = #tpu.pipeline_mode<synchronous>, transform_indices = @transform_3, window_bounds = array<i64: 128, 8>}, {pipeline_mode = #tpu.pipeline_mode<synchronous>, transform_indices = @transform_4, window_bounds = array<i64: 1, 8>}, {transform_indices = @transform_5, window_bounds = array<i64: 8, 8>}]} {
    %c0 = arith.constant 0 : index
    %c0_0 = arith.constant 0 : index
    %0 = vector.load %arg1[%c0, %c0_0] : memref<8x512xbf16, #tpu.memory_space<vmem>>, vector<8x512xbf16>
    %c0_1 = arith.constant 0 : index
    %c0_2 = arith.constant 0 : index
    %1 = vector.load %arg2[%c0_1, %c0_2] : memref<512x128xbf16, #tpu.memory_space<vmem>>, vector<512x128xbf16>
    %cst = arith.constant dense<0.000000e+00> : vector<8x128xf32>
    %2 = tpu.matmul %0, %1, %cst {dimension_numbers = #tpu.dot_dimension_numbers<[1], [0], [0], [1], [0, 0, 1, 1], [], []>} : vector<8x512xbf16>, vector<512x128xbf16>, vector<8x128xf32> -> vector<8x128xf32>
    %c0_3 = arith.constant 0 : index
    %c0_4 = arith.constant 0 : index
    %3 = vector.load %arg3[%c0_3, %c0_4] : memref<1x128xf32, #tpu.memory_space<vmem>>, vector<1x128xf32>
    %4 = vector.broadcast %3 : vector<1x128xf32> to vector<8x128xf32>
    %5 = arith.addf %2, %4 : vector<8x128xf32>
    %cst_5 = arith.constant 0.000000e+00 : f32
    %6 = vector.broadcast %cst_5 : f32 to vector<8x128xf32>
    %7 = arith.maximumf %5, %6 : vector<8x128xf32>
    %c0_6 = arith.constant 0 : index
    %c0_7 = arith.constant 0 : index
    %8 = vector.load %arg4[%c0_6, %c0_7] : memref<128x8xf32, #tpu.memory_space<vmem>>, vector<128x8xf32>
    %cst_8 = arith.constant dense<0.000000e+00> : vector<8x8xf32>
    %9 = tpu.matmul %7, %8, %cst_8 {dimension_numbers = #tpu.dot_dimension_numbers<[1], [0], [0], [1], [0, 0, 1, 1], [], []>} : vector<8x128xf32>, vector<128x8xf32>, vector<8x8xf32> -> vector<8x8xf32>
    %c0_9 = arith.constant 0 : index
    %c0_10 = arith.constant 0 : index
    %10 = vector.load %arg5[%c0_9, %c0_10] : memref<1x8xf32, #tpu.memory_space<vmem>>, vector<1x8xf32>
    %11 = vector.broadcast %10 : vector<1x8xf32> to vector<8x8xf32>
    %12 = arith.addf %9, %11 : vector<8x8xf32>
    %cst_11 = arith.constant 0.000000e+00 : f32
    %13 = vector.broadcast %cst_11 : f32 to vector<8x8xf32>
    %14 = arith.maximumf %12, %13 : vector<8x8xf32>
    %c0_12 = arith.constant 0 : index
    %c0_13 = arith.constant 0 : index
    %15 = vector.load %arg6[%c0_12, %c0_13] : memref<8x8xf32, #tpu.memory_space<vmem>>, vector<8x8xf32>
    tpu.vector_store %arg6[%c0_12, %c0_13], %14 {strides = array<i32>} : memref<8x8xf32, #tpu.memory_space<vmem>>, vector<8x8xf32>,
    return
  }
  func.func @transform_0(%arg0: i32) -> (i32, i32) {
    %c0_i32 = arith.constant 0 : i32
    %c0_i32_0 = arith.constant 0 : i32
    return %arg0, %c0_i32 : i32, i32
  }
  func.func @transform_1(%arg0: i32) -> (i32, i32) {
    %c0_i32 = arith.constant 0 : i32
    %c0_i32_0 = arith.constant 0 : i32
    %c0_i32_1 = arith.constant 0 : i32
    return %c0_i32, %c0_i32_0 : i32, i32
  }
  func.func @transform_2(%arg0: i32) -> (i32, i32) {
    %c0_i32 = arith.constant 0 : i32
    %c0_i32_0 = arith.constant 0 : i32
    %c0_i32_1 = arith.constant 0 : i32
    return %c0_i32, %c0_i32_0 : i32, i32
  }
  func.func @transform_3(%arg0: i32) -> (i32, i32) {
    %c0_i32 = arith.constant 0 : i32
    %c0_i32_0 = arith.constant 0 : i32
    %c0_i32_1 = arith.constant 0 : i32
    return %c0_i32, %c0_i32_0 : i32, i32
  }
  func.func @transform_4(%arg0: i32) -> (i32, i32) {
    %c0_i32 = arith.constant 0 : i32
    %c0_i32_0 = arith.constant 0 : i32
    %c0_i32_1 = arith.constant 0 : i32
    return %c0_i32, %c0_i32_0 : i32, i32
  }
  func.func @transform_5(%arg0: i32) -> (i32, i32) {
    %c0_i32 = arith.constant 0 : i32
    %c0_i32_0 = arith.constant 0 : i32
    return %arg0, %c0_i32 : i32, i32
  }
}

</mosaic_0001>

<llo_original>
// kernel: mlp_forward.1
$region0: #{mlp_forward.1}
  #allocation0 [shape = 'u32[]', space=smem, size = 0x4, offset = 0x4, fixed_abs, tag = 'smem constant byte address 0x4 - core index']
  #allocation1 [shape = 'u32[72,128]{1,0:T(1,128)}', space=vmem, size = 0x9000, scoped, tag = 'internal scratch']
  %s0 = inlined_call_operand.vmem [shape: bf16[8,512], index: 0, kind: input, shape index: {}]
  %s1 = inlined_call_operand.hbm [shape: bf16[512,128], index: 1, kind: input, shape index: {}]
  %s2 = inlined_call_operand.vmem [shape: f32[1,128], index: 2, kind: input, shape index: {}]
  %s3 = inlined_call_operand.vmem [shape: f32[128,8], index: 3, kind: input, shape index: {}]
  %s4 = inlined_call_operand.vmem [shape: f32[1,8], index: 4, kind: input, shape index: {}]
  %s5 = inlined_call_operand.vmem [shape: f32[8,8], index: 5, kind: output, shape index: {}]
  %s6 = sld [smem:[#allocation0]]
  $region34: #{mlp_forward.1} parent=0
    _
  %s8 = ssub.s32 1, %s6
  %s9 = scalar_select 0, %s8, %s6
  $region1: #{mlp_forward.1} parent=0
    #allocation2 [shape = 'u8[131072]{0}', space=vmem, size = 0x20000, scoped, tag = 'input window, operand 1, single buffered']
    #allocation3 [shape = 's32[1]{0}', space=sflag, size = 0x4, scoped, tag = 'scoped memory for mlp_forward.1']
    %10 = vsyncpa [#allocation3], 0
    // Predicated region
    $region2: #{mlp_forward.1} parent=1 // pred_check
      _
    $region3: #{mlp_forward.1} parent=1 // pred_check_branch
      %12 = sbr.rel (0) target = $region5
    $region4: #{mlp_forward.1} parent=1 // pred_region
      _
    $region5: #{mlp_forward.1} parent=1 // pred_fallthru
      _
    // Predicated region
    $region6: #{mlp_forward.1} parent=1 // pred_check
      _
    $region7: #{mlp_forward.1} parent=1 // pred_check_branch
      %14 = sbr.rel (0) target = $region9
    $region8: #{mlp_forward.1} parent=1 // pred_region
      %16 = vsyncadd [#allocation3], 0
      %s17 = sshll.u32 %s1, 4
      %s18 = int_to_ptr.hbm [resolvable:$true] %s17
      %s19 = sshll.u32 [#allocation2], 4
      %s20 = int_to_ptr.vmem [resolvable:$true] %s19
      %25 = dma.hbm_to_vmem [thread:$0]  %s18, 4096, %s20, [#allocation3], 64, 64, 4
    $region9: #{mlp_forward.1} parent=1 // pred_fallthru
      _
    // Predicated region
    $region10: #{mlp_forward.1} parent=1 // pred_check
      _
    $region11: #{mlp_forward.1} parent=1 // pred_check_branch
      %27 = sbr.rel (0) target = $region13
    $region12: #{mlp_forward.1} parent=1 // pred_region
      _
    $region13: #{mlp_forward.1} parent=1 // pred_fallthru
      _
    // Predicated region
    $region14: #{mlp_forward.1} parent=1 // pred_check
      _
    $region15: #{mlp_forward.1} parent=1 // pred_check_branch
      %29 = sbr.rel (0) target = $region17
    $region16: #{mlp_forward.1} parent=1 // pred_region
      _
    $region17: #{mlp_forward.1} parent=1 // pred_fallthru
      _
    // Predicated region
    $region18: #{mlp_forward.1} parent=1 // pred_check
      _
    $region19: #{mlp_forward.1} parent=1 // pred_check_branch
      %31 = sbr.rel (0) target = $region21
    $region20: #{mlp_forward.1} parent=1 // pred_region
      _
    $region21: #{mlp_forward.1} parent=1 // pred_fallthru
      _
    // Predicated region
    $region22: #{mlp_forward.1} parent=1 // pred_check
      _
    $region23: #{mlp_forward.1} parent=1 // pred_check_branch
      %33 = sbr.rel (0) target = $region25
    $region24: #{mlp_forward.1} parent=1 // pred_region
      %35 = dma.done [#allocation3], 4096
    $region25: #{mlp_forward.1} parent=1 // pred_fallthru
      _
    %v36 = vld [vmem:[%s0] sm:$0xff]
    %v37 = vld [vmem:[%s0 + $0x8] sm:$0xff]
    %v38 = vld [vmem:[#allocation2] sm:$0xf]
    %v39 = vld [vmem:[#allocation2 + $0x4] sm:$0xf]
    %v40 = vld [vmem:[#allocation2 + $0x8] sm:$0xf]
    %v41 = vld [vmem:[#allocation2 + $0xc] sm:$0xf]
    %v42 = vld [vmem:[#allocation2 + $0x10] sm:$0xf]
    %v43 = vld [vmem:[#allocation2 + $0x14] sm:$0xf]
    %v44 = vld [vmem:[#allocation2 + $0x18] sm:$0xf]
    %v45 = vld [vmem:[#allocation2 + $0x1c] sm:$0xf]
    %v46 = vld [vmem:[#allocation2 + $0x20] sm:$0xf]
    %v47 = vld [vmem:[#allocation2 + $0x24] sm:$0xf]
    %v48 = vld [vmem:[#allocation2 + $0x28] sm:$0xf]
    %v49 = vld [vmem:[#allocation2 + $0x2c] sm:$0xf]
    %v50 = vld [vmem:[#allocation2 + $0x30] sm:$0xf]
    %v51 = vld [vmem:[#allocation2 + $0x34] sm:$0xf]
    %v52 = vld [vmem:[#allocation2 + $0x38] sm:$0xf]
    %v53 = vld [vmem:[#allocation2 + $0x3c] sm:$0xf]
    %v54 = vld [vmem:[#allocation2 + $0x40] sm:$0xf]
    %v55 = vld [vmem:[#allocation2 + $0x44] sm:$0xf]
    %v56 = vld [vmem:[#allocation2 + $0x48] sm:$0xf]
    %v57 = vld [vmem:[#allocation2 + $0x4c] sm:$0xf]
    %v58 = vld [vmem:[#allocation2 + $0x50] sm:$0xf]
    %v59 = vld [vmem:[#allocation2 + $0x54] sm:$0xf]
    %v60 = vld [vmem:[#allocation2 + $0x58] sm:$0xf]
    %v61 = vld [vmem:[#allocation2 + $0x5c] sm:$0xf]
    %v62 = vld [vmem:[#allocation2 + $0x60] sm:$0xf]
    %v63 = vld [vmem:[#allocation2 + $0x64] sm:$0xf]
    %v64 = vld [vmem:[#allocation2 + $0x68] sm:$0xf]
    %v65 = vld [vmem:[#allocation2 + $0x6c] sm:$0xf]
    %v66 = vld [vmem:[#allocation2 + $0x70] sm:$0xf]
    %v67 = vld [vmem:[#allocation2 + $0x74] sm:$0xf]
    %v68 = vld [vmem:[#allocation2 + $0x78] sm:$0xf]
    %v69 = vld [vmem:[#allocation2 + $0x7c] sm:$0xf]
    %v70 = vld [vmem:[#allocation2 + $0x80] sm:$0xf]
    %v71 = vld [vmem:[#allocation2 + $0x84] sm:$0xf]
    %v72 = vld [vmem:[#allocation2 + $0x88] sm:$0xf]
    %v73 = vld [vmem:[#allocation2 + $0x8c] sm:$0xf]
    %v74 = vld [vmem:[#allocation2 + $0x90] sm:$0xf]
    %v75 = vld [vmem:[#allocation2 + $0x94] sm:$0xf]
    %v76 = vld [vmem:[#allocation2 + $0x98] sm:$0xf]
    %v77 = vld [vmem:[#allocation2 + $0x9c] sm:$0xf]
    %v78 = vld [vmem:[#allocation2 + $0xa0] sm:$0xf]
    %v79 = vld [vmem:[#allocation2 + $0xa4] sm:$0xf]
    %v80 = vld [vmem:[#allocation2 + $0xa8] sm:$0xf]
    %v81 = vld [vmem:[#allocation2 + $0xac] sm:$0xf]
    %v82 = vld [vmem:[#allocation2 + $0xb0] sm:$0xf]
    %v83 = vld [vmem:[#allocation2 + $0xb4] sm:$0xf]
    %v84 = vld [vmem:[#allocation2 + $0xb8] sm:$0xf]
    %v85 = vld [vmem:[#allocation2 + $0xbc] sm:$0xf]
    %v86 = vld [vmem:[#allocation2 + $0xc0] sm:$0xf]
    %v87 = vld [vmem:[#allocation2 + $0xc4] sm:$0xf]
    %v88 = vld [vmem:[#allocation2 + $0xc8] sm:$0xf]
    %v89 = vld [vmem:[#allocation2 + $0xcc] sm:$0xf]
    %v90 = vld [vmem:[#allocation2 + $0xd0] sm:$0xf]
    %v91 = vld [vmem:[#allocation2 + $0xd4] sm:$0xf]
    %v92 = vld [vmem:[#allocation2 + $0xd8] sm:$0xf]
    %v93 = vld [vmem:[#allocation2 + $0xdc] sm:$0xf]
    %v94 = vld [vmem:[#allocation2 + $0xe0] sm:$0xf]
    %v95 = vld [vmem:[#allocation2 + $0xe4] sm:$0xf]
    %v96 = vld [vmem:[#allocation2 + $0xe8] sm:$0xf]
    %v97 = vld [vmem:[#allocation2 + $0xec] sm:$0xf]
    %v98 = vld [vmem:[#allocation2 + $0xf0] sm:$0xf]
    %v99 = vld [vmem:[#allocation2 + $0xf4] sm:$0xf]
    %v100 = vld [vmem:[#allocation2 + $0xf8] sm:$0xf]
    %v101 = vld [vmem:[#allocation2 + $0xfc] sm:$0xf]
    %v102 = vld [vmem:[%s2] sm:$0x1]
    %v104 = vperm.slane %v102, 0
    %v108 = vunpack.c.l.b16 %v36
    %v109 = vunpack.c.h.b16 %v36
    %v110 = vunpack.c.l.b16 %v37
    %v111 = vunpack.c.h.b16 %v37
    %v112 = vpack.c.b16 %v108, %v108
    %v113 = vpack.c.b16 %v109, %v109
    %v114 = vpack.c.b16 %v110, %v110
    %v115 = vpack.c.b16 %v111, %v111
    %v184 = vunpack.c.l.b16 %v38
    %v185 = vunpack.c.l.b16 %v39
    %v186 = vunpack.c.l.b16 %v40
    %v187 = vunpack.c.l.b16 %v41
    %v188 = vunpack.c.l.b16 %v42
    %v189 = vunpack.c.l.b16 %v43
    %v190 = vunpack.c.l.b16 %v44
    %v191 = vunpack.c.l.b16 %v45
    %v192 = vunpack.c.l.b16 %v46
    %v193 = vunpack.c.l.b16 %v47
    %v194 = vunpack.c.l.b16 %v48
    %v195 = vunpack.c.l.b16 %v49
    %v196 = vunpack.c.l.b16 %v50
    %v197 = vunpack.c.l.b16 %v51
    %v198 = vunpack.c.l.b16 %v52
    %v199 = vunpack.c.l.b16 %v53
    %v200 = vunpack.c.l.b16 %v54
    %v201 = vunpack.c.l.b16 %v55
    %v202 = vunpack.c.l.b16 %v56
    %v203 = vunpack.c.l.b16 %v57
    %v204 = vunpack.c.l.b16 %v58
    %v205 = vunpack.c.l.b16 %v59
    %v206 = vunpack.c.l.b16 %v60
    %v207 = vunpack.c.l.b16 %v61
    %v208 = vunpack.c.l.b16 %v62
    %v209 = vunpack.c.l.b16 %v63
    %v210 = vunpack.c.l.b16 %v64
    %v211 = vunpack.c.l.b16 %v65
    %v212 = vunpack.c.l.b16 %v66
    %v213 = vunpack.c.l.b16 %v67
    %v214 = vunpack.c.l.b16 %v68
    %v215 = vunpack.c.l.b16 %v69
    %v216 = vunpack.c.l.b16 %v70
    %v217 = vunpack.c.l.b16 %v71
    %v218 = vunpack.c.l.b16 %v72
    %v219 = vunpack.c.l.b16 %v73
    %v220 = vunpack.c.l.b16 %v74
    %v221 = vunpack.c.l.b16 %v75
    %v222 = vunpack.c.l.b16 %v76
    %v223 = vunpack.c.l.b16 %v77
    %v224 = vunpack.c.l.b16 %v78
    %v225 = vunpack.c.l.b16 %v79
    %v226 = vunpack.c.l.b16 %v80
    %v227 = vunpack.c.l.b16 %v81
    %v228 = vunpack.c.l.b16 %v82
    %v229 = vunpack.c.l.b16 %v83
    %v230 = vunpack.c.l.b16 %v84
    %v231 = vunpack.c.l.b16 %v85
    %v232 = vunpack.c.l.b16 %v86
    %v233 = vunpack.c.l.b16 %v87
    %v234 = vunpack.c.l.b16 %v88
    %v235 = vunpack.c.l.b16 %v89
    %v236 = vunpack.c.l.b16 %v90
    %v237 = vunpack.c.l.b16 %v91
    %v238 = vunpack.c.l.b16 %v92
    %v239 = vunpack.c.l.b16 %v93
    %v240 = vunpack.c.l.b16 %v94
    %v241 = vunpack.c.l.b16 %v95
    %v242 = vunpack.c.l.b16 %v96
    %v243 = vunpack.c.l.b16 %v97
    %v244 = vunpack.c.l.b16 %v98
    %v245 = vunpack.c.l.b16 %v99
    %v246 = vunpack.c.l.b16 %v100
    %v247 = vunpack.c.l.b16 %v101
    %v248 = vpack.c.b16 %v185, %v184
    %v249 = vpack.c.b16 %v187, %v186
    %v250 = vpack.c.b16 %v189, %v188
    %v251 = vpack.c.b16 %v191, %v190
    %v252 = vpack.c.b16 %v193, %v192
    %v253 = vpack.c.b16 %v195, %v194
    %v254 = vpack.c.b16 %v197, %v196
    %v255 = vpack.c.b16 %v199, %v198
    %v256 = vpack.c.b16 %v201, %v200
    %v257 = vpack.c.b16 %v203, %v202
    %v258 = vpack.c.b16 %v205, %v204
    %v259 = vpack.c.b16 %v207, %v206
    %v260 = vpack.c.b16 %v209, %v208
    %v261 = vpack.c.b16 %v211, %v210
    %v262 = vpack.c.b16 %v213, %v212
    %v263 = vpack.c.b16 %v215, %v214
    %v264 = vpack.c.b16 %v217, %v216
    %v265 = vpack.c.b16 %v219, %v218
    %v266 = vpack.c.b16 %v221, %v220
    %v267 = vpack.c.b16 %v223, %v222
    %v268 = vpack.c.b16 %v225, %v224
    %v269 = vpack.c.b16 %v227, %v226
    %v270 = vpack.c.b16 %v229, %v228
    %v271 = vpack.c.b16 %v231, %v230
    %v272 = vpack.c.b16 %v233, %v232
    %v273 = vpack.c.b16 %v235, %v234
    %v274 = vpack.c.b16 %v237, %v236
    %v275 = vpack.c.b16 %v239, %v238
    %v276 = vpack.c.b16 %v241, %v240
    %v277 = vpack.c.b16 %v243, %v242
    %v278 = vpack.c.b16 %v245, %v244
    %v279 = vpack.c.b16 %v247, %v246
    %312 = vmatpush.bf16.msra.mxu0 %v255
    %313 = vmatpush.bf16.msra.mxu0 %v254
    %314 = vmatpush.bf16.msra.mxu0 %v253
    %315 = vmatpush.bf16.msra.mxu0 %v252
    %316 = vmatpush.bf16.msra.mxu0 %v251
    %317 = vmatpush.bf16.msra.mxu0 %v250
    %318 = vmatpush.bf16.msra.mxu0 %v249
    %319 = vmatpush.bf16.msra.mxu0 %v248
    %320 = vmatmul.bf16.gmra.mxu0 %v112
    %v321 = vpop.f32.mrf.mxu0
    %v322 = vadd.f32 %v104, %v321
    %v323 = vpop.f32.mrf.mxu0
    %324 = vdwg.mxu0
    %325 = vmatpush.bf16.msra.mxu0 %v263
    %326 = vmatpush.bf16.msra.mxu0 %v262
    %327 = vmatpush.bf16.msra.mxu0 %v261
    %328 = vmatpush.bf16.msra.mxu0 %v260
    %329 = vmatpush.bf16.msra.mxu0 %v259
    %330 = vmatpush.bf16.msra.mxu0 %v258
    %331 = vmatpush.bf16.msra.mxu0 %v257
    %332 = vmatpush.bf16.msra.mxu0 %v256
    %333 = vmatmul.bf16.gmra.mxu0 %v113
    %v334 = vpop.f32.mrf.mxu0
    %v335 = vadd.f32 %v322, %v334
    %v336 = vpop.f32.mrf.mxu0
    %337 = vdwg.mxu0
    %338 = vmatpush.bf16.msra.mxu0 %v271
    %339 = vmatpush.bf16.msra.mxu0 %v270
    %340 = vmatpush.bf16.msra.mxu0 %v269
    %341 = vmatpush.bf16.msra.mxu0 %v268
    %342 = vmatpush.bf16.msra.mxu0 %v267
    %343 = vmatpush.bf16.msra.mxu0 %v266
    %344 = vmatpush.bf16.msra.mxu0 %v265
    %345 = vmatpush.bf16.msra.mxu0 %v264
    %346 = vmatmul.bf16.gmra.mxu0 %v114
    %v347 = vpop.f32.mrf.mxu0
    %v348 = vadd.f32 %v335, %v347
    %v349 = vpop.f32.mrf.mxu0
    %350 = vdwg.mxu0
    %351 = vmatpush.bf16.msra.mxu0 %v279
    %352 = vmatpush.bf16.msra.mxu0 %v278
    %353 = vmatpush.bf16.msra.mxu0 %v277
    %354 = vmatpush.bf16.msra.mxu0 %v276
    %355 = vmatpush.bf16.msra.mxu0 %v275
    %356 = vmatpush.bf16.msra.mxu0 %v274
    %357 = vmatpush.bf16.msra.mxu0 %v273
    %358 = vmatpush.bf16.msra.mxu0 %v272
    %359 = vmatmul.bf16.gmra.mxu0 %v115
    %v360 = vpop.f32.mrf.mxu0
    %v361 = vadd.f32 %v348, %v360
    %v362 = vpop.f32.mrf.mxu0
    %363 = vdwg.mxu0
    %v364 = vmax.f32 %v361, 0.0
    %v365 = vld [vmem:[%s3] sm:$0xff]
    %v366 = vld [vmem:[%s3 + $0x8] sm:$0xff]
    %v367 = vld [vmem:[%s3 + $0x10] sm:$0xff]
    %v368 = vld [vmem:[%s3 + $0x18] sm:$0xff]
    %v369 = vld [vmem:[%s3 + $0x20] sm:$0xff]
    %v370 = vld [vmem:[%s3 + $0x28] sm:$0xff]
    %v371 = vld [vmem:[%s3 + $0x30] sm:$0xff]
    %v372 = vld [vmem:[%s3 + $0x38] sm:$0xff]
    %v373 = vld [vmem:[%s3 + $0x40] sm:$0xff]
    %v374 = vld [vmem:[%s3 + $0x48] sm:$0xff]
    %v375 = vld [vmem:[%s3 + $0x50] sm:$0xff]
    %v376 = vld [vmem:[%s3 + $0x58] sm:$0xff]
    %v377 = vld [vmem:[%s3 + $0x60] sm:$0xff]
    %v378 = vld [vmem:[%s3 + $0x68] sm:$0xff]
    %v379 = vld [vmem:[%s3 + $0x70] sm:$0xff]
    %v380 = vld [vmem:[%s3 + $0x78] sm:$0xff]
    %v381 = vld [vmem:[%s4] sm:$0x1]
    %v383 = vperm.slane %v381, 0
    %385 = vmatpush.msra.mxu0 %v380
    %386 = vmatpush.msra.mxu0 %v379
    %387 = vmatpush.msra.mxu0 %v378
    %388 = vmatpush.msra.mxu0 %v377
    %389 = vmatpush.msra.mxu0 %v376
    %390 = vmatpush.msra.mxu0 %v375
    %391 = vmatpush.msra.mxu0 %v374
    %392 = vmatpush.msra.mxu0 %v373
    %393 = vmatpush.msra.mxu0 %v372
    %394 = vmatpush.msra.mxu0 %v371
    %395 = vmatpush.msra.mxu0 %v370
    %396 = vmatpush.msra.mxu0 %v369
    %397 = vmatpush.msra.mxu0 %v368
    %398 = vmatpush.msra.mxu0 %v367
    %399 = vmatpush.msra.mxu0 %v366
    %400 = vmatpush.msra.mxu0 %v365
    %401 = vmatmul.f32.gmra.mxu0 %v364
    %v402 = vpop.f32.mrf.mxu0
    %v403 = vadd.f32 %v383, %v402
    %404 = vdwg.mxu0
    %v405 = vmax.f32 %v403, 0.0
    %vm406 = vcmask 64512
    %407 = vst.msk [vmem:[%s5] sm:$0xff] %vm406, %v405
    // Predicated region
    $region26: #{mlp_forward.1} parent=1 // pred_check
      _
    $region27: #{mlp_forward.1} parent=1 // pred_check_branch
      %409 = sbr.rel (0) target = $region29
    $region28: #{mlp_forward.1} parent=1 // pred_region
      _
    $region29: #{mlp_forward.1} parent=1 // pred_fallthru
      _
    // Predicated region
    $region30: #{mlp_forward.1} parent=1 // pred_check
      _
    $region31: #{mlp_forward.1} parent=1 // pred_check_branch
      %411 = sbr.rel (0) target = $region33
    $region32: #{mlp_forward.1} parent=1 // pred_region
      _
    $region33: #{mlp_forward.1} parent=1 // pred_fallthru
      _
    %412 = vsyncpa [#allocation3], 1

</llo_original>
